<compile_context>
chip_gen: v6e
topology: v6e:2x2x1
jax: 0.10.0
libtpu: 0.0.40
codegen_flags: <defaults>
</compile_context>

<pallas_src>
import functools
import math

import jax
import jax.numpy as jnp
from jax.experimental import pallas as pl
from jax.experimental.pallas import tpu as pltpu


# ----------------------------------------------------------------------------
# Kernel 1: fused QKV projection -> head-group-major Q / K / V (bf16)
# ----------------------------------------------------------------------------
def _qkv_proj_kernel(x_ref, wq_ref, wk_ref, wv_ref, bq_ref, bk_ref, bv_ref,
                     q_ref, k_ref, v_ref):
    """One (batch, seq-tile) grid step.

    x_ref        : (1, TQ, Din)    bf16
    wq/wk/wv_ref : (HG, Din, Ghd)  bf16  full slabs, constant index_map
                   (1/sqrt(head_dim) already folded into wq)
    bq/bk/bv_ref : (HG, 1, Ghd)    f32
    q/k/v_ref    : (1, HG, TQ, Ghd) bf16 outputs
    """
    f32 = jnp.float32
    x = x_ref[0]                                            # (TQ, Din)
    HG = q_ref.shape[1]
    for hg in range(HG):                                    # static, unrolled
        q = jnp.dot(x, wq_ref[hg], preferred_element_type=f32) + bq_ref[hg]
        k = jnp.dot(x, wk_ref[hg], preferred_element_type=f32) + bk_ref[hg]
        v = jnp.dot(x, wv_ref[hg], preferred_element_type=f32) + bv_ref[hg]
        q_ref[0, hg] = q.astype(q_ref.dtype)
        k_ref[0, hg] = k.astype(k_ref.dtype)
        v_ref[0, hg] = v.astype(v_ref.dtype)


# ----------------------------------------------------------------------------
# Kernel 2: attention + output projection (per head group, accumulated)
# ----------------------------------------------------------------------------
def _attn_body(q_ref, k_ref, v_ref, wo_ref, bo_ref, o_ref, acc_ref,
               *, G, hd, bias_ref=None, per_head_bias=False):
    """One (batch, query-tile, head-group) grid step.

    q_ref    : (1, 1, TQ, Ghd) bf16   this group's query rows
    k_ref    : (1, 1, S,  Ghd) bf16   this group's keys (full sequence)
    v_ref    : (1, 1, S,  Ghd) bf16   this group's values
    wo_ref   : (HG, Ghd, E)    bf16   full W_o^T slab (constant index_map)
    bo_ref   : (1, E)          f32
    bias_ref : (1, Gb, TQ, S)  bf16   additive mask bias (optional)
    o_ref    : (1, TQ, E)      f32    written once at the last head group
    acc_ref  : (TQ, E)         f32    VMEM scratch accumulator
    """
    # TODO(synk): flash-style online-softmax KV tiling for very long S
    # (v7x's 64 MiB VMEM); K/V are currently whole-sequence per head group.
    f32, bf16 = jnp.float32, jnp.bfloat16
    hg = pl.program_id(2)

    q_all = q_ref[0, 0]                                     # (TQ, Ghd)
    k_all = k_ref[0, 0]                                     # (S,  Ghd)
    v_all = v_ref[0, 0]                                     # (S,  Ghd)

    vals_parts = []
    for g in range(G):                                      # static, unrolled
        lo = g * hd
        qg = q_all[:, lo:lo + hd]
        kg = k_all[:, lo:lo + hd]
        vg = v_all[:, lo:lo + hd]

        # logits = q @ k^T (scale already folded into W_q); f32 accumulation.
        logits = jax.lax.dot_general(
            qg, kg, dimension_numbers=(((1,), (1,)), ((), ())),
            preferred_element_type=f32)                     # (TQ, S)
        if bias_ref is not None:
            bias = bias_ref[0, g] if per_head_bias else bias_ref[0, 0]
            logits = logits + bias.astype(f32)

        # Numerically-stable softmax in f32; the divide goes to the EUP.
        m = jnp.max(logits, axis=-1, keepdims=True)
        p = jnp.exp(logits - m)
        denom = jnp.sum(p, axis=-1, keepdims=True)
        attn = p * pl.reciprocal(denom, approx=True)        # (TQ, S)

        vals_parts.append(jnp.dot(attn.astype(bf16), vg,
                                  preferred_element_type=f32))   # (TQ, hd)

    vals = vals_parts[0] if G == 1 else jnp.concatenate(vals_parts, axis=-1)

    # This group's contribution to the output projection (depth-Ghd matmul).
    part = jnp.dot(vals.astype(bf16), wo_ref[hg],
                   preferred_element_type=f32)              # (TQ, E)

    @pl.when(hg == 0)
    def _init():
        acc_ref[...] = part

    @pl.when(hg != 0)
    def _accumulate():
        acc_ref[...] = acc_ref[...] + part

    @pl.when(hg == pl.num_programs(2) - 1)
    def _finalize():
        o_ref[0] = (acc_ref[...] + bo_ref[...]).astype(o_ref.dtype)


def _attn_kernel_nomask(q_ref, k_ref, v_ref, wo_ref, bo_ref, o_ref, acc_ref,
                        *, G, hd):
    _attn_body(q_ref, k_ref, v_ref, wo_ref, bo_ref, o_ref, acc_ref, G=G, hd=hd)


def _attn_kernel_mask(q_ref, k_ref, v_ref, bias_ref, wo_ref, bo_ref, o_ref,
                      acc_ref, *, G, hd, per_head_bias):
    _attn_body(q_ref, k_ref, v_ref, wo_ref, bo_ref, o_ref, acc_ref,
               G=G, hd=hd, bias_ref=bias_ref, per_head_bias=per_head_bias)


# ----------------------------------------------------------------------------
# Python-side module glue
# ----------------------------------------------------------------------------
def expand_mask(mask):
    """Same semantics as the PyTorch helper: expand to 4-D (broadcast dims stay 1)."""
    assert mask.ndim >= 2, 'Mask must be >= 2-dim. with seq_length x seq_length'
    if mask.ndim == 3:
        mask = mask[:, None, :, :]
    while mask.ndim < 4:
        mask = mask[None, ...]
    return mask


def _head_group_size(num_heads, head_dim, target_lanes=128):
    """Largest divisor G of num_heads with G*head_dim <= max(128, head_dim)."""
    best = 1
    limit = max(target_lanes, head_dim)
    for g in range(1, num_heads + 1):
        if num_heads % g == 0 and g * head_dim <= limit:
            best = g
    return best


def _pick_q_tile(seq_len, target=512):
    """Largest divisor of seq_len <= target, preferring multiples of 16 (bf16
    sublane packing), then 8; falls back to the full sequence."""
    if seq_len <= target:
        return seq_len
    for step in (16, 8):
        t = (target // step) * step
        while t >= step:
            if seq_len % t == 0:
                return t
            t -= step
    # TODO(synk): pad + mask ragged sequence lengths instead of the full-S
    # fallback (which reintroduces (S, S) logits and can blow VMEM on v7x).
    return seq_len


def _vmem_limit_bytes():
    """~3/4 of physical VMEM (96 MiB on v5e/v6e, 48 MiB on v7x), capped at 112 MiB."""
    cap = None
    try:
        info = pltpu.get_tpu_info()
        for attr in ("vmem_capacity_bytes", "vmem_size_bytes", "vmem_bytes"):
            cap = getattr(info, attr, None)
            if cap:
                break
    except Exception:
        cap = None
    if not cap:
        return 64 * 1024 * 1024
    return int(min(cap * 3 // 4, 112 * 1024 * 1024))


class MultiheadAttention:
    """Pallas implementation of the PyTorch MultiheadAttention module."""
    # TODO(synk): return_attention=True (exposing the (B,H,S,S) attention map)
    # is not implemented; only the default output path is supported.

    def __init__(self, input_dim, embed_dim, num_heads, key):
        assert embed_dim % num_heads == 0, \
            'Embedding dim. must be 0 modulo number of heads.'
        self.input_dim = input_dim
        self.embed_dim = embed_dim
        self.num_heads = num_heads
        self.head_dim = embed_dim // num_heads

        H, hd, E, Din = num_heads, self.head_dim, embed_dim, input_dim
        self.group = G = _head_group_size(H, hd)
        self.num_groups = HG = H // G
        self.group_dim = Ghd = G * hd

        k1, k2 = jax.random.split(key)

        # nn.Linear weights (xavier_uniform), biases zero -- f32 source of truth.
        bound_qkv = math.sqrt(6.0 / (Din + 3 * E))
        w_qkv = jax.random.uniform(k1, (3 * E, Din), minval=-bound_qkv,
                                   maxval=bound_qkv, dtype=jnp.float32)
        bound_o = math.sqrt(6.0 / (E + E))
        w_o = jax.random.uniform(k2, (E, E), minval=-bound_o, maxval=bound_o,
                                 dtype=jnp.float32)
        b_qkv = jnp.zeros((3 * E,), jnp.float32)
        b_o = jnp.zeros((E,), jnp.float32)
        self.w_qkv, self.b_qkv, self.w_o, self.b_o = w_qkv, b_qkv, w_o, b_o

        # --- kernel parameters: head-GROUP-major slabs, bf16, scale in W_q ---
        scale = 1.0 / math.sqrt(hd)
        w3 = w_qkv.reshape(H, 3, hd, Din)       # row j = h*3*hd + which*hd + d
        b3 = b_qkv.reshape(H, 3, hd)

        def group_w(w_heads):                   # (H, hd, Din) -> (HG, Din, Ghd)
            return jnp.transpose(w_heads.reshape(HG, Ghd, Din),
                                 (0, 2, 1)).astype(jnp.bfloat16)

        def group_b(b_heads):                   # (H, hd) -> (HG, 1, Ghd)
            return b_heads.reshape(HG, 1, Ghd).astype(jnp.float32)

        self.wq_g = group_w(w3[:, 0] * scale)
        self.wk_g = group_w(w3[:, 1])
        self.wv_g = group_w(w3[:, 2])
        self.bq_g = group_b(b3[:, 0] * scale)
        self.bk_g = group_b(b3[:, 1])
        self.bv_g = group_b(b3[:, 2])

        # o = sum_hg values_hg @ (W_o^T)[hg*Ghd:(hg+1)*Ghd, :]
        self.wo_g = w_o.T.reshape(HG, Ghd, E).astype(jnp.bfloat16)  # (HG,Ghd,E)
        self.bo = b_o.reshape(1, E).astype(jnp.float32)

    def __call__(self, x, mask=None):
        B, S, Din = x.shape
        assert Din == self.input_dim
        E, H, hd = self.embed_dim, self.num_heads, self.head_dim
        G, HG, Ghd = self.group, self.num_groups, self.group_dim

        TQ = _pick_q_tile(S)
        nq = S // TQ
        vmem_limit = _vmem_limit_bytes()
        x_bf = x.astype(jnp.bfloat16)

        # ---------------- Kernel 1: QKV projection (K/V computed once) ------
        const3 = lambda b, i: (0, 0, 0)
        qkv_shape = jax.ShapeDtypeStruct((B, HG, S, Ghd), jnp.bfloat16)
        q_arr, k_arr, v_arr = pl.pallas_call(
            _qkv_proj_kernel,
            out_shape=(qkv_shape, qkv_shape, qkv_shape),
            grid_spec=pltpu.PrefetchScalarGridSpec(
                num_scalar_prefetch=0,
                grid=(B, nq),
                in_specs=[
                    pl.BlockSpec((1, TQ, Din), lambda b, i: (b, i, 0)),
                    pl.BlockSpec((HG, Din, Ghd), const3),
                    pl.BlockSpec((HG, Din, Ghd), const3),
                    pl.BlockSpec((HG, Din, Ghd), const3),
                    pl.BlockSpec((HG, 1, Ghd), const3),
                    pl.BlockSpec((HG, 1, Ghd), const3),
                    pl.BlockSpec((HG, 1, Ghd), const3),
                ],
                out_specs=[pl.BlockSpec((1, HG, TQ, Ghd),
                                        lambda b, i: (b, 0, i, 0))] * 3,
            ),
            compiler_params=pltpu.CompilerParams(
                dimension_semantics=("parallel", "parallel"),
                vmem_limit_bytes=vmem_limit),
        )(x_bf, self.wq_g, self.wk_g, self.wv_g,
          self.bq_g, self.bk_g, self.bv_g)

        # ---------------- Kernel 2: attention + output projection -----------
        q_spec = pl.BlockSpec((1, 1, TQ, Ghd), lambda b, qi, hg: (b, hg, qi, 0))
        kv_spec = pl.BlockSpec((1, 1, S, Ghd), lambda b, qi, hg: (b, hg, 0, 0))
        wo_spec = pl.BlockSpec((HG, Ghd, E), lambda b, qi, hg: (0, 0, 0))
        bo_spec = pl.BlockSpec((1, E), lambda b, qi, hg: (0, 0))
        out_spec = pl.BlockSpec((1, TQ, E), lambda b, qi, hg: (b, qi, 0))
        out_shape = jax.ShapeDtypeStruct((B, S, E), jnp.float32)
        scratch = [pltpu.VMEM((TQ, E), jnp.float32)]

        if mask is None:
            kernel = functools.partial(_attn_kernel_nomask, G=G, hd=hd)
            in_specs = [q_spec, kv_spec, kv_spec, wo_spec, bo_spec]
            args = (q_arr, k_arr, v_arr, self.wo_g, self.bo)
        else:
            m4 = expand_mask(mask)                  # broadcast dims stay size 1
            Bm, Hm, S1, S2 = m4.shape
            assert S1 == S and S2 == S
            assert Bm in (1, B) and Hm in (1, H)
            # Additive bias: 0 where kept, ~-9e15 where masked; bf16 halves bytes.
            bias = jnp.where(m4 == 0, jnp.float32(-9e15),
                             jnp.float32(0.0)).astype(jnp.bfloat16)
            per_head = (Hm == H)
            bsel = (lambda b: b) if Bm == B else (lambda b: 0)
            if per_head:
                bias_spec = pl.BlockSpec(
                    (1, G, TQ, S), lambda b, qi, hg: (bsel(b), hg, qi, 0))
            else:
                bias_spec = pl.BlockSpec(
                    (1, 1, TQ, S), lambda b, qi, hg: (bsel(b), 0, qi, 0))
            kernel = functools.partial(_attn_kernel_mask, G=G, hd=hd,
                                       per_head_bias=per_head)
            in_specs = [q_spec, kv_spec, kv_spec, bias_spec, wo_spec, bo_spec]
            args = (q_arr, k_arr, v_arr, bias, self.wo_g, self.bo)

        return pl.pallas_call(
            kernel,
            out_shape=out_shape,
            grid_spec=pltpu.PrefetchScalarGridSpec(
                num_scalar_prefetch=0,
                grid=(B, nq, HG),
                in_specs=in_specs,
                out_specs=out_spec,
                scratch_shapes=scratch),
            compiler_params=pltpu.CompilerParams(
                dimension_semantics=("parallel", "parallel", "arbitrary"),
                vmem_limit_bytes=vmem_limit),
        )(*args)


# ----------------------------------------------------------------------------
# Pure-JAX f32 reference (PyTorch semantics) for the correctness check
# ----------------------------------------------------------------------------
def _reference(x, mask, mha):
    B, S, _ = x.shape
    H, hd, E = mha.num_heads, mha.head_dim, mha.embed_dim
    qkv = x @ mha.w_qkv.T + mha.b_qkv                            # (B,S,3E)
    qkv = qkv.reshape(B, S, H, 3 * hd).transpose(0, 2, 1, 3)     # (B,H,S,3hd)
    q, k, v = jnp.split(qkv, 3, axis=-1)
    logits = jnp.einsum('bhqd,bhkd->bhqk', q, k) / math.sqrt(hd)
    if mask is not None:
        m = jnp.broadcast_to(expand_mask(mask), logits.shape)
        logits = jnp.where(m == 0, -9e15, logits)
    attn = jax.nn.softmax(logits, axis=-1)
    vals = jnp.einsum('bhqk,bhkd->bhqd', attn, v)                # (B,H,S,hd)
    vals = vals.transpose(0, 2, 1, 3).reshape(B, S, E)
    return vals @ mha.w_o.T + mha.b_o


# ----------------------------------------------------------------------------
if __name__ == "__main__":
    key = jax.random.PRNGKey(0)
    k_param, k_x = jax.random.split(key, 2)

    batch, seq, input_dim, embed_dim, num_heads = 2, 8, 32, 32, 2

    mha = MultiheadAttention(input_dim, embed_dim, num_heads, k_param)
    x = jax.random.normal(k_x, (batch, seq, input_dim), dtype=jnp.float32)

    # Causal 2-D mask (broadcast over batch and heads); no fully-masked rows.
    mask2d = jnp.tril(jnp.ones((seq, seq), dtype=jnp.float32))
    # 3-D per-batch mask (broadcast over heads) exercises the batch-indexed bias.
    mask3d = jnp.broadcast_to(mask2d, (batch, seq, seq))

    # bf16 MXU operands (f32 accumulation) vs. a pure-f32 reference -> loosened tol.
    tol = dict(atol=3e-2, rtol=3e-2)

    # No-mask path
    out = mha(x)
    jax.block_until_ready(out)
    ref = _reference(x, None, mha)
    assert out.shape == ref.shape
    assert jnp.allclose(out, ref, **tol), "mismatch (no mask)"

    # 2-D masked path
    out_m = mha(x, mask=mask2d)
    jax.block_until_ready(out_m)
    ref_m = _reference(x, mask2d, mha)
    assert jnp.allclose(out_m, ref_m, **tol), "mismatch (2-D mask)"

    # 3-D masked path
    out_m3 = mha(x, mask=mask3d)
    jax.block_until_ready(out_m3)
    ref_m3 = _reference(x, mask3d, mha)
    assert jnp.allclose(out_m3, ref_m3, **tol), "mismatch (3-D mask)"

    print("KERNEL_OK")
</pallas_src>

<mosaic_0001>
module attributes {stable_mosaic.version = 11 : i64} {
  func.func @_qkv_proj_kernel(%arg0: i32, %arg1: i32, %arg2: memref<1x8x32xbf16, #tpu.memory_space<vmem>>, %arg3: memref<1x32x32xbf16, #tpu.memory_space<vmem>>, %arg4: memref<1x32x32xbf16, #tpu.memory_space<vmem>>, %arg5: memref<1x32x32xbf16, #tpu.memory_space<vmem>>, %arg6: memref<1x1x32xf32, #tpu.memory_space<vmem>>, %arg7: memref<1x1x32xf32, #tpu.memory_space<vmem>>, %arg8: memref<1x1x32xf32, #tpu.memory_space<vmem>>, %arg9: memref<1x1x8x32xbf16, #tpu.memory_space<vmem>>, %arg10: memref<1x1x8x32xbf16, #tpu.memory_space<vmem>>, %arg11: memref<1x1x8x32xbf16, #tpu.memory_space<vmem>>) attributes {dimension_semantics = [#tpu.dimension_semantics<parallel>, #tpu.dimension_semantics<parallel>], iteration_bounds = array<i64: 2, 1>, scalar_prefetch = 0 : i64, scratch_operands = 0 : i64, tpu.core_type = #tpu.core_type<tc>, window_params = [{transform_indices = @transform_0, window_bounds = array<i64: 1, 8, 32>}, {pipeline_mode = #tpu.pipeline_mode<synchronous>, transform_indices = @transform_1, window_bounds = array<i64: 1, 32, 32>}, {pipeline_mode = #tpu.pipeline_mode<synchronous>, transform_indices = @transform_2, window_bounds = array<i64: 1, 32, 32>}, {pipeline_mode = #tpu.pipeline_mode<synchronous>, transform_indices = @transform_3, window_bounds = array<i64: 1, 32, 32>}, {pipeline_mode = #tpu.pipeline_mode<synchronous>, transform_indices = @transform_4, window_bounds = array<i64: 1, 1, 32>}, {pipeline_mode = #tpu.pipeline_mode<synchronous>, transform_indices = @transform_5, window_bounds = array<i64: 1, 1, 32>}, {pipeline_mode = #tpu.pipeline_mode<synchronous>, transform_indices = @transform_6, window_bounds = array<i64: 1, 1, 32>}, {transform_indices = @transform_7, window_bounds = array<i64: 1, 1, 8, 32>}, {transform_indices = @transform_8, window_bounds = array<i64: 1, 1, 8, 32>}, {transform_indices = @transform_9, window_bounds = array<i64: 1, 1, 8, 32>}]} {
    %c0 = arith.constant 0 : index
    %c0_0 = arith.constant 0 : index
    %c0_1 = arith.constant 0 : index
    %0 = vector.load %arg2[%c0, %c0_0, %c0_1] : memref<1x8x32xbf16, #tpu.memory_space<vmem>>, vector<1x8x32xbf16>
    %1 = vector.shape_cast %0 : vector<1x8x32xbf16> to vector<8x32xbf16>
    %c0_2 = arith.constant 0 : index
    %c0_3 = arith.constant 0 : index
    %c0_4 = arith.constant 0 : index
    %2 = vector.load %arg3[%c0_2, %c0_3, %c0_4] : memref<1x32x32xbf16, #tpu.memory_space<vmem>>, vector<1x32x32xbf16>
    %3 = vector.shape_cast %2 : vector<1x32x32xbf16> to vector<32x32xbf16>
    %cst = arith.constant dense<0.000000e+00> : vector<8x32xf32>
    %4 = tpu.matmul %1, %3, %cst {dimension_numbers = #tpu.dot_dimension_numbers<[1], [0], [0], [1], [0, 0, 1, 1], [], []>} : vector<8x32xbf16>, vector<32x32xbf16>, vector<8x32xf32> -> vector<8x32xf32>
    %c0_5 = arith.constant 0 : index
    %c0_6 = arith.constant 0 : index
    %c0_7 = arith.constant 0 : index
    %5 = vector.load %arg6[%c0_5, %c0_6, %c0_7] : memref<1x1x32xf32, #tpu.memory_space<vmem>>, vector<1x1x32xf32>
    %6 = vector.shape_cast %5 : vector<1x1x32xf32> to vector<1x32xf32>
    %7 = vector.broadcast %6 : vector<1x32xf32> to vector<8x32xf32>
    %8 = arith.addf %4, %7 : vector<8x32xf32>
    %c0_8 = arith.constant 0 : index
    %c0_9 = arith.constant 0 : index
    %c0_10 = arith.constant 0 : index
    %9 = vector.load %arg4[%c0_8, %c0_9, %c0_10] : memref<1x32x32xbf16, #tpu.memory_space<vmem>>, vector<1x32x32xbf16>
    %10 = vector.shape_cast %9 : vector<1x32x32xbf16> to vector<32x32xbf16>
    %cst_11 = arith.constant dense<0.000000e+00> : vector<8x32xf32>
    %11 = tpu.matmul %1, %10, %cst_11 {dimension_numbers = #tpu.dot_dimension_numbers<[1], [0], [0], [1], [0, 0, 1, 1], [], []>} : vector<8x32xbf16>, vector<32x32xbf16>, vector<8x32xf32> -> vector<8x32xf32>
    %c0_12 = arith.constant 0 : index
    %c0_13 = arith.constant 0 : index
    %c0_14 = arith.constant 0 : index
    %12 = vector.load %arg7[%c0_12, %c0_13, %c0_14] : memref<1x1x32xf32, #tpu.memory_space<vmem>>, vector<1x1x32xf32>
    %13 = vector.shape_cast %12 : vector<1x1x32xf32> to vector<1x32xf32>
    %14 = vector.broadcast %13 : vector<1x32xf32> to vector<8x32xf32>
    %15 = arith.addf %11, %14 : vector<8x32xf32>
    %c0_15 = arith.constant 0 : index
    %c0_16 = arith.constant 0 : index
    %c0_17 = arith.constant 0 : index
    %16 = vector.load %arg5[%c0_15, %c0_16, %c0_17] : memref<1x32x32xbf16, #tpu.memory_space<vmem>>, vector<1x32x32xbf16>
    %17 = vector.shape_cast %16 : vector<1x32x32xbf16> to vector<32x32xbf16>
    %cst_18 = arith.constant dense<0.000000e+00> : vector<8x32xf32>
    %18 = tpu.matmul %1, %17, %cst_18 {dimension_numbers = #tpu.dot_dimension_numbers<[1], [0], [0], [1], [0, 0, 1, 1], [], []>} : vector<8x32xbf16>, vector<32x32xbf16>, vector<8x32xf32> -> vector<8x32xf32>
    %c0_19 = arith.constant 0 : index
    %c0_20 = arith.constant 0 : index
    %c0_21 = arith.constant 0 : index
    %19 = vector.load %arg8[%c0_19, %c0_20, %c0_21] : memref<1x1x32xf32, #tpu.memory_space<vmem>>, vector<1x1x32xf32>
    %20 = vector.shape_cast %19 : vector<1x1x32xf32> to vector<1x32xf32>
    %21 = vector.broadcast %20 : vector<1x32xf32> to vector<8x32xf32>
    %22 = arith.addf %18, %21 : vector<8x32xf32>
    %23 = arith.truncf %8 : vector<8x32xf32> to vector<8x32xbf16>
    %c0_22 = arith.constant 0 : index
    %c0_23 = arith.constant 0 : index
    %c0_24 = arith.constant 0 : index
    %c0_25 = arith.constant 0 : index
    %24 = vector.load %arg9[%c0_22, %c0_23, %c0_24, %c0_25] : memref<1x1x8x32xbf16, #tpu.memory_space<vmem>>, vector<1x1x8x32xbf16>
    %25 = vector.shape_cast %24 : vector<1x1x8x32xbf16> to vector<8x32xbf16>
    %26 = vector.shape_cast %23 : vector<8x32xbf16> to vector<1x1x8x32xbf16>
    tpu.vector_store %arg9[%c0_22, %c0_23, %c0_24, %c0_25], %26 {strides = array<i32>} : memref<1x1x8x32xbf16, #tpu.memory_space<vmem>>, vector<1x1x8x32xbf16>,
    %27 = arith.truncf %15 : vector<8x32xf32> to vector<8x32xbf16>
    %c0_26 = arith.constant 0 : index
    %c0_27 = arith.constant 0 : index
    %c0_28 = arith.constant 0 : index
    %c0_29 = arith.constant 0 : index
    %28 = vector.load %arg10[%c0_26, %c0_27, %c0_28, %c0_29] : memref<1x1x8x32xbf16, #tpu.memory_space<vmem>>, vector<1x1x8x32xbf16>
    %29 = vector.shape_cast %28 : vector<1x1x8x32xbf16> to vector<8x32xbf16>
    %30 = vector.shape_cast %27 : vector<8x32xbf16> to vector<1x1x8x32xbf16>
    tpu.vector_store %arg10[%c0_26, %c0_27, %c0_28, %c0_29], %30 {strides = array<i32>} : memref<1x1x8x32xbf16, #tpu.memory_space<vmem>>, vector<1x1x8x32xbf16>,
    %31 = arith.truncf %22 : vector<8x32xf32> to vector<8x32xbf16>
    %c0_30 = arith.constant 0 : index
    %c0_31 = arith.constant 0 : index
    %c0_32 = arith.constant 0 : index
    %c0_33 = arith.constant 0 : index
    %32 = vector.load %arg11[%c0_30, %c0_31, %c0_32, %c0_33] : memref<1x1x8x32xbf16, #tpu.memory_space<vmem>>, vector<1x1x8x32xbf16>
    %33 = vector.shape_cast %32 : vector<1x1x8x32xbf16> to vector<8x32xbf16>
    %34 = vector.shape_cast %31 : vector<8x32xbf16> to vector<1x1x8x32xbf16>
    tpu.vector_store %arg11[%c0_30, %c0_31, %c0_32, %c0_33], %34 {strides = array<i32>} : memref<1x1x8x32xbf16, #tpu.memory_space<vmem>>, vector<1x1x8x32xbf16>,
    return
  }
  func.func @transform_0(%arg0: i32, %arg1: i32) -> (i32, i32, i32) {
    %c0_i32 = arith.constant 0 : i32
    %c0_i32_0 = arith.constant 0 : i32
    return %arg0, %arg1, %c0_i32 : i32, i32, i32
  }
  func.func @transform_1(%arg0: i32, %arg1: i32) -> (i32, i32, i32) {
    %c0_i32 = arith.constant 0 : i32
    %c0_i32_0 = arith.constant 0 : i32
    %c0_i32_1 = arith.constant 0 : i32
    %c0_i32_2 = arith.constant 0 : i32
    return %c0_i32, %c0_i32_0, %c0_i32_1 : i32, i32, i32
  }
  func.func @transform_2(%arg0: i32, %arg1: i32) -> (i32, i32, i32) {
    %c0_i32 = arith.constant 0 : i32
    %c0_i32_0 = arith.constant 0 : i32
    %c0_i32_1 = arith.constant 0 : i32
    %c0_i32_2 = arith.constant 0 : i32
    return %c0_i32, %c0_i32_0, %c0_i32_1 : i32, i32, i32
  }
  func.func @transform_3(%arg0: i32, %arg1: i32) -> (i32, i32, i32) {
    %c0_i32 = arith.constant 0 : i32
    %c0_i32_0 = arith.constant 0 : i32
    %c0_i32_1 = arith.constant 0 : i32
    %c0_i32_2 = arith.constant 0 : i32
    return %c0_i32, %c0_i32_0, %c0_i32_1 : i32, i32, i32
  }
  func.func @transform_4(%arg0: i32, %arg1: i32) -> (i32, i32, i32) {
    %c0_i32 = arith.constant 0 : i32
    %c0_i32_0 = arith.constant 0 : i32
    %c0_i32_1 = arith.constant 0 : i32
    %c0_i32_2 = arith.constant 0 : i32
    return %c0_i32, %c0_i32_0, %c0_i32_1 : i32, i32, i32
  }
  func.func @transform_5(%arg0: i32, %arg1: i32) -> (i32, i32, i32) {
    %c0_i32 = arith.constant 0 : i32
    %c0_i32_0 = arith.constant 0 : i32
    %c0_i32_1 = arith.constant 0 : i32
    %c0_i32_2 = arith.constant 0 : i32
    return %c0_i32, %c0_i32_0, %c0_i32_1 : i32, i32, i32
  }
  func.func @transform_6(%arg0: i32, %arg1: i32) -> (i32, i32, i32) {
    %c0_i32 = arith.constant 0 : i32
    %c0_i32_0 = arith.constant 0 : i32
    %c0_i32_1 = arith.constant 0 : i32
    %c0_i32_2 = arith.constant 0 : i32
    return %c0_i32, %c0_i32_0, %c0_i32_1 : i32, i32, i32
  }
  func.func @transform_7(%arg0: i32, %arg1: i32) -> (i32, i32, i32, i32) {
    %c0_i32 = arith.constant 0 : i32
    %c0_i32_0 = arith.constant 0 : i32
    %c0_i32_1 = arith.constant 0 : i32
    return %arg0, %c0_i32, %arg1, %c0_i32_0 : i32, i32, i32, i32
  }
  func.func @transform_8(%arg0: i32, %arg1: i32) -> (i32, i32, i32, i32) {
    %c0_i32 = arith.constant 0 : i32
    %c0_i32_0 = arith.constant 0 : i32
    %c0_i32_1 = arith.constant 0 : i32
    return %arg0, %c0_i32, %arg1, %c0_i32_0 : i32, i32, i32, i32
  }
  func.func @transform_9(%arg0: i32, %arg1: i32) -> (i32, i32, i32, i32) {
    %c0_i32 = arith.constant 0 : i32
    %c0_i32_0 = arith.constant 0 : i32
    %c0_i32_1 = arith.constant 0 : i32
    return %arg0, %c0_i32, %arg1, %c0_i32_0 : i32, i32, i32, i32
  }
}

</mosaic_0001>

<llo_original>
// kernel: tpu_custom_call.1
$region0: #{tpu_custom_call.1}
  #allocation0 [shape = 'u32[]', space=smem, size = 0x4, offset = 0x4, fixed_abs, tag = 'smem constant byte address 0x4 - core index']
  #allocation1 [shape = 'u32[144,128]{1,0:T(1,128)}', space=vmem, size = 0x12000, scoped, tag = 'internal scratch']
  %s0 = inlined_call_operand.hbm [shape: bf16[2,8,32], index: 0, kind: input, shape index: {}]
  %s1 = inlined_call_operand.hbm [shape: bf16[1,32,32], index: 1, kind: input, shape index: {}]
  %s2 = inlined_call_operand.hbm [shape: bf16[1,32,32], index: 2, kind: input, shape index: {}]
  %s3 = inlined_call_operand.hbm [shape: bf16[1,32,32], index: 3, kind: input, shape index: {}]
  %s4 = inlined_call_operand.vmem [shape: f32[1,1,32], index: 4, kind: input, shape index: {}]
  %s5 = inlined_call_operand.vmem [shape: f32[1,1,32], index: 5, kind: input, shape index: {}]
  %s6 = inlined_call_operand.vmem [shape: f32[1,1,32], index: 6, kind: input, shape index: {}]
  %s7 = inlined_call_operand.hbm [shape: bf16[2,1,8,32], index: 7, kind: output, shape index: {0}]
  %s8 = inlined_call_operand.hbm [shape: bf16[2,1,8,32], index: 8, kind: output, shape index: {1}]
  %s9 = inlined_call_operand.hbm [shape: bf16[2,1,8,32], index: 9, kind: output, shape index: {2}]
  %10 = xla_tuple %s7, %s8, %s9
  %s11 = sld [smem:[#allocation0]]
  $region93: #{tpu_custom_call.1} parent=0
    _
  %s13 = ssub.s32 1, %s11
  %s14 = scalar_select 0, %s13, %s11
  $region1: #{tpu_custom_call.1} parent=0
    #allocation2 [shape = 'u8[4096]{0}', space=vmem, size = 0x1000, scoped, tag = 'input window, operand 0']
    #allocation3 [shape = 's32[2]{0}', space=sflag, size = 0x8, scoped, tag = 'scoped memory for tpu_custom_call.1']
    #allocation4 [shape = 's32[2]{0}', space=sflag, size = 0x8, scoped, tag = 'scoped memory for tpu_custom_call.1']
    #allocation5 [shape = 'u8[8192]{0}', space=vmem, size = 0x2000, scoped, tag = 'input window, operand 1, single buffered']
    #allocation6 [shape = 's32[1]{0}', space=sflag, size = 0x4, scoped, tag = 'scoped memory for tpu_custom_call.1']
    #allocation7 [shape = 'u8[8192]{0}', space=vmem, size = 0x2000, scoped, tag = 'input window, operand 2, single buffered']
    #allocation8 [shape = 'u8[8192]{0}', space=vmem, size = 0x2000, scoped, tag = 'input window, operand 3, single buffered']
    #allocation9 [shape = 's32[1]{0}', space=sflag, size = 0x4, scoped, tag = 'scoped memory for tpu_custom_call.1']
    #allocation10 [shape = 'u8[4096]{0}', space=vmem, size = 0x1000, scoped, tag = 'output window, operand 0']
    #allocation11 [shape = 'u8[4096]{0}', space=vmem, size = 0x1000, scoped, tag = 'output window, operand 1']
    #allocation12 [shape = 's32[2]{0}', space=sflag, size = 0x8, scoped, tag = 'scoped memory for tpu_custom_call.1']
    #allocation13 [shape = 'u8[4096]{0}', space=vmem, size = 0x1000, scoped, tag = 'output window, operand 2']
    %15 = vsyncpa [#allocation3], 0
    %s16 = scalar_lea.sflag [#allocation3], 1
    %17 = vsyncpa %s16, 0
    %18 = vsyncpa [#allocation6], 0
    %19 = vsyncpa [#allocation9], 0
    %20 = vsyncpa [#allocation4], 0
    %s21 = scalar_lea.sflag [#allocation4], 1
    %22 = vsyncpa %s21, 0
    %23 = vsyncpa [#allocation12], 0
    %s24 = scalar_lea.sflag [#allocation12], 1
    %25 = vsyncpa %s24, 0
    loop: start=0, step=1, limit=4
    $region2: #{tpu_custom_call.1} parent=1 // loop_pre_header
      _
    $region3: #{tpu_custom_call.1} parent=1 // loop_header
      %s27 = sphi 0, %s31
      %p28 = scmp.ge.s32.totalorder %s27, 4
      %s34 = sphi 0, %s46
      %s35 = sphi 0, %s42
      %s36 = sphi 0, %s34
      %s37 = sphi 0, %s35
      %s38 = sphi 0, %s36
      %s39 = sphi 0, %s37
      %s51 = sphi 0, %s53
      %s54 = sphi 0, %s51
      %s55 = sphi 0, %s54
      %s71 = sphi 0, %s55
      %s75 = sphi 0, %s75
      %s77 = sphi 0, %s75
      %s78 = sphi 0, %s77
      %s92 = sphi 0, %s78
      %s96 = sphi 0, %s96
      %s98 = sphi 0, %s96
      %s99 = sphi 0, %s98
      %s113 = sphi 0, %s99
      %s117 = sphi 0, %s117
      %s119 = sphi 0, %s117
      %s120 = sphi 0, %s119
      %s134 = sphi 0, %s120
      %s138 = sphi 0, %s138
      %s140 = sphi 0, %s138
      %s141 = sphi 0, %s140
      %s155 = sphi 0, %s141
      %s159 = sphi 0, %s159
      %s161 = sphi 0, %s159
      %s162 = sphi 0, %s161
      %s176 = sphi 0, %s162
      %s180 = sphi 0, %s180
      %s182 = sphi 0, %s180
      %s183 = sphi 0, %s182
      %s197 = sphi 0, %s183
      %s205 = sphi 0, %s207
      %s208 = sphi 0, %s205
      %s209 = sphi 0, %s208
      %s225 = sphi 0, %s209
      %s233 = sphi 0, %s235
      %s236 = sphi 0, %s233
      %s237 = sphi 0, %s236
      %s253 = sphi 0, %s237
      %s261 = sphi 0, %s263
      %s264 = sphi 0, %s261
      %s265 = sphi 0, %s264
      %s281 = sphi 0, %s265
    $region4: #{tpu_custom_call.1} parent=1 // loop_header_branch
      %30 = sbr.rel (%p28) target = $region8
    $region5: #{tpu_custom_call.1} parent=1 // loop_body
      %s32 = ssub.s32 %s27, 1
      %s33 = ssub.s32 %s27, 2
      %s40 = sadd.s32 1, %s35
      %p41 = scmp.ge.s32.totalorder %s40, 1
      %s42 = scalar_select %p41, 0, %s40
      %s43 = sadd.s32 1, %s34
      %s44 = scalar_select %p41, %s43, %s34
      %p45 = scmp.ge.s32.totalorder %s44, 2
      %s46 = scalar_select %p45, 0, %s44
      %s47 = ssub.s32 %s34, %s46
      %s48 = ssub.s32 %s35, %s42
      %s49 = sor.u32 %s47, %s48
      %p50 = scmp.eq.s32.totalorder %s49, 0
      %s52 = sadd.s32 %s51, 1
      %s53 = scalar_select %p50, %s51, %s52
      %p56 = pneg %p50
      %p57 = scmp.eq.s32.totalorder %s27, 1
      %p58 = por %p56, %p57
      %p59 = scmp.ne.s32.totalorder %s51, %s54
      %p60 = scmp.eq.s32.totalorder %s27, 0
      %p61 = por %p59, %p60
      %p62 = scmp.ne.s32.totalorder %s51, %s54
      %p63 = scmp.eq.s32.totalorder %s32, 1
      %p64 = por %p62, %p63
      %p65 = scmp.ne.s32.totalorder %s54, %s55
      %p66 = scmp.eq.s32.totalorder %s32, 0
      %p67 = por %p65, %p66
      %p68 = scmp.ne.s32.totalorder %s54, %s55
      %p69 = scmp.eq.s32.totalorder %s33, 1
      %p70 = por %p68, %p69
      %p72 = scmp.ne.s32.totalorder %s55, %s71
      %p73 = scmp.eq.s32.totalorder %s33, 0
      %p74 = por %p72, %p73
      %s76 = sadd.s32 %s75, 1
      %p79 = scmp.eq.s32.totalorder %s27, 1
      %p80 = scmp.ne.s32.totalorder %s75, %s77
      %p81 = scmp.eq.s32.totalorder %s27, 0
      %p82 = por %p80, %p81
      %p83 = scmp.ne.s32.totalorder %s75, %s77
      %p84 = scmp.eq.s32.totalorder %s32, 1
      %p85 = por %p83, %p84
      %p86 = scmp.ne.s32.totalorder %s77, %s78
      %p87 = scmp.eq.s32.totalorder %s32, 0
      %p88 = por %p86, %p87
      %p89 = scmp.ne.s32.totalorder %s77, %s78
      %p90 = scmp.eq.s32.totalorder %s33, 1
      %p91 = por %p89, %p90
      %p93 = scmp.ne.s32.totalorder %s78, %s92
      %p94 = scmp.eq.s32.totalorder %s33, 0
      %p95 = por %p93, %p94
      %s97 = sadd.s32 %s96, 1
      %p100 = scmp.eq.s32.totalorder %s27, 1
      %p101 = scmp.ne.s32.totalorder %s96, %s98
      %p102 = scmp.eq.s32.totalorder %s27, 0
      %p103 = por %p101, %p102
      %p104 = scmp.ne.s32.totalorder %s96, %s98
      %p105 = scmp.eq.s32.totalorder %s32, 1
      %p106 = por %p104, %p105
      %p107 = scmp.ne.s32.totalorder %s98, %s99
      %p108 = scmp.eq.s32.totalorder %s32, 0
      %p109 = por %p107, %p108
      %p110 = scmp.ne.s32.totalorder %s98, %s99
      %p111 = scmp.eq.s32.totalorder %s33, 1
      %p112 = por %p110, %p111
      %p114 = scmp.ne.s32.totalorder %s99, %s113
      %p115 = scmp.eq.s32.totalorder %s33, 0
      %p116 = por %p114, %p115
      %s118 = sadd.s32 %s117, 1
      %p121 = scmp.eq.s32.totalorder %s27, 1
      %p122 = scmp.ne.s32.totalorder %s117, %s119
      %p123 = scmp.eq.s32.totalorder %s27, 0
      %p124 = por %p122, %p123
      %p125 = scmp.ne.s32.totalorder %s117, %s119
      %p126 = scmp.eq.s32.totalorder %s32, 1
      %p127 = por %p125, %p126
      %p128 = scmp.ne.s32.totalorder %s119, %s120
      %p129 = scmp.eq.s32.totalorder %s32, 0
      %p130 = por %p128, %p129
      %p131 = scmp.ne.s32.totalorder %s119, %s120
      %p132 = scmp.eq.s32.totalorder %s33, 1
      %p133 = por %p131, %p132
      %p135 = scmp.ne.s32.totalorder %s120, %s134
      %p136 = scmp.eq.s32.totalorder %s33, 0
      %p137 = por %p135, %p136
      %s139 = sadd.s32 %s138, 1
      %p142 = scmp.eq.s32.totalorder %s27, 1
      %p143 = scmp.ne.s32.totalorder %s138, %s140
      %p144 = scmp.eq.s32.totalorder %s27, 0
      %p145 = por %p143, %p144
      %p146 = scmp.ne.s32.totalorder %s138, %s140
      %p147 = scmp.eq.s32.totalorder %s32, 1
      %p148 = por %p146, %p147
      %p149 = scmp.ne.s32.totalorder %s140, %s141
      %p150 = scmp.eq.s32.totalorder %s32, 0
      %p151 = por %p149, %p150
      %p152 = scmp.ne.s32.totalorder %s140, %s141
      %p153 = scmp.eq.s32.totalorder %s33, 1
      %p154 = por %p152, %p153
      %p156 = scmp.ne.s32.totalorder %s141, %s155
      %p157 = scmp.eq.s32.totalorder %s33, 0
      %p158 = por %p156, %p157
      %s160 = sadd.s32 %s159, 1
      %p163 = scmp.eq.s32.totalorder %s27, 1
      %p164 = scmp.ne.s32.totalorder %s159, %s161
      %p165 = scmp.eq.s32.totalorder %s27, 0
      %p166 = por %p164, %p165
      %p167 = scmp.ne.s32.totalorder %s159, %s161
      %p168 = scmp.eq.s32.totalorder %s32, 1
      %p169 = por %p167, %p168
      %p170 = scmp.ne.s32.totalorder %s161, %s162
      %p171 = scmp.eq.s32.totalorder %s32, 0
      %p172 = por %p170, %p171
      %p173 = scmp.ne.s32.totalorder %s161, %s162
      %p174 = scmp.eq.s32.totalorder %s33, 1
      %p175 = por %p173, %p174
      %p177 = scmp.ne.s32.totalorder %s162, %s176
      %p178 = scmp.eq.s32.totalorder %s33, 0
      %p179 = por %p177, %p178
      %s181 = sadd.s32 %s180, 1
      %p184 = scmp.eq.s32.totalorder %s27, 1
      %p185 = scmp.ne.s32.totalorder %s180, %s182
      %p186 = scmp.eq.s32.totalorder %s27, 0
      %p187 = por %p185, %p186
      %p188 = scmp.ne.s32.totalorder %s180, %s182
      %p189 = scmp.eq.s32.totalorder %s32, 1
      %p190 = por %p188, %p189
      %p191 = scmp.ne.s32.totalorder %s182, %s183
      %p192 = scmp.eq.s32.totalorder %s32, 0
      %p193 = por %p191, %p192
      %p194 = scmp.ne.s32.totalorder %s182, %s183
      %p195 = scmp.eq.s32.totalorder %s33, 1
      %p196 = por %p194, %p195
      %p198 = scmp.ne.s32.totalorder %s183, %s197
      %p199 = scmp.eq.s32.totalorder %s33, 0
      %p200 = por %p198, %p199
      %s201 = ssub.s32 %s34, %s46
      %s202 = ssub.s32 %s35, %s42
      %s203 = sor.u32 %s201, %s202
      %p204 = scmp.eq.s32.totalorder %s203, 0
      %s206 = sadd.s32 %s205, 1
      %s207 = scalar_select %p204, %s205, %s206
      %p210 = pneg %p204
      %p211 = scmp.eq.s32.totalorder %s27, 1
      %p212 = por %p210, %p211
      %p213 = scmp.ne.s32.totalorder %s205, %s208
      %p214 = scmp.eq.s32.totalorder %s27, 0
      %p215 = por %p213, %p214
      %p216 = scmp.ne.s32.totalorder %s205, %s208
      %p217 = scmp.eq.s32.totalorder %s32, 1
      %p218 = por %p216, %p217
      %p219 = scmp.ne.s32.totalorder %s208, %s209
      %p220 = scmp.eq.s32.totalorder %s32, 0
      %p221 = por %p219, %p220
      %p222 = scmp.ne.s32.totalorder %s208, %s209
      %p223 = scmp.eq.s32.totalorder %s33, 1
      %p224 = por %p222, %p223
      %p226 = scmp.ne.s32.totalorder %s209, %s225
      %p227 = scmp.eq.s32.totalorder %s33, 0
      %p228 = por %p226, %p227
      %s229 = ssub.s32 %s34, %s46
      %s230 = ssub.s32 %s35, %s42
      %s231 = sor.u32 %s229, %s230
      %p232 = scmp.eq.s32.totalorder %s231, 0
      %s234 = sadd.s32 %s233, 1
      %s235 = scalar_select %p232, %s233, %s234
      %p238 = pneg %p232
      %p239 = scmp.eq.s32.totalorder %s27, 1
      %p240 = por %p238, %p239
      %p241 = scmp.ne.s32.totalorder %s233, %s236
      %p242 = scmp.eq.s32.totalorder %s27, 0
      %p243 = por %p241, %p242
      %p244 = scmp.ne.s32.totalorder %s233, %s236
      %p245 = scmp.eq.s32.totalorder %s32, 1
      %p246 = por %p244, %p245
      %p247 = scmp.ne.s32.totalorder %s236, %s237
      %p248 = scmp.eq.s32.totalorder %s32, 0
      %p249 = por %p247, %p248
      %p250 = scmp.ne.s32.totalorder %s236, %s237
      %p251 = scmp.eq.s32.totalorder %s33, 1
      %p252 = por %p250, %p251
      %p254 = scmp.ne.s32.totalorder %s237, %s253
      %p255 = scmp.eq.s32.totalorder %s33, 0
      %p256 = por %p254, %p255
      %s257 = ssub.s32 %s34, %s46
      %s258 = ssub.s32 %s35, %s42
      %s259 = sor.u32 %s257, %s258
      %p260 = scmp.eq.s32.totalorder %s259, 0
      %s262 = sadd.s32 %s261, 1
      %s263 = scalar_select %p260, %s261, %s262
      %p266 = pneg %p260
      %p267 = scmp.eq.s32.totalorder %s27, 1
      %p268 = por %p266, %p267
      %p269 = scmp.ne.s32.totalorder %s261, %s264
      %p270 = scmp.eq.s32.totalorder %s27, 0
      %p271 = por %p269, %p270
      %p272 = scmp.ne.s32.totalorder %s261, %s264
      %p273 = scmp.eq.s32.totalorder %s32, 1
      %p274 = por %p272, %p273
      %p275 = scmp.ne.s32.totalorder %s264, %s265
      %p276 = scmp.eq.s32.totalorder %s32, 0
      %p277 = por %p275, %p276
      %p278 = scmp.ne.s32.totalorder %s264, %s265
      %p279 = scmp.eq.s32.totalorder %s33, 1
      %p280 = por %p278, %p279
      %p282 = scmp.ne.s32.totalorder %s265, %s281
      %p283 = scmp.eq.s32.totalorder %s33, 0
      %p284 = por %p282, %p283
      %p285 = scmp.le.s32.totalorder 1, %s27
      %p286 = scmp.lt.s32.totalorder %s27, 3
      %p287 = pnand %p285, %p286
      %p288 = pneg %p287
      // Predicated region
      $region9: #{tpu_custom_call.1} parent=5 // pred_check
        _
      $region10: #{tpu_custom_call.1} parent=5 // pred_check_branch
        %290 = sbr.rel (%p287) target = $region12
      $region11: #{tpu_custom_call.1} parent=5 // pred_region
        %s291 = ssub.s32 %s27, 1
        // Predicated region
        $region13: #{tpu_custom_call.1} parent=11 // pred_check
          %p292 = pneg %p88
        $region14: #{tpu_custom_call.1} parent=11 // pred_check_branch
          %294 = sbr.rel (%p292) target = $region16
        $region15: #{tpu_custom_call.1} parent=11 // pred_region
          %s296 = ssub.s32 256, 256
          %297 = vsyncadd [#allocation6], %s296
          %s298 = sshll.u32 [#allocation5], 4
          %s299 = int_to_ptr.vmem [resolvable:$true] %s298
          %304 = dma.hbm_to_vmem [thread:$0]  %s1, 256, %s299, [#allocation6], 64, 64, 4
        $region16: #{tpu_custom_call.1} parent=11 // pred_fallthru
          _
        // Predicated region
        $region17: #{tpu_custom_call.1} parent=11 // pred_check
          %p305 = pneg %p109
        $region18: #{tpu_custom_call.1} parent=11 // pred_check_branch
          %307 = sbr.rel (%p305) target = $region20
        $region19: #{tpu_custom_call.1} parent=11 // pred_region
          %s309 = ssub.s32 256, 256
          %310 = vsyncadd [#allocation6], %s309
          %s311 = sshll.u32 [#allocation7], 4
          %s312 = int_to_ptr.vmem [resolvable:$true] %s311
          %317 = dma.hbm_to_vmem [thread:$0]  %s2, 256, %s312, [#allocation6], 64, 64, 4
        $region20: #{tpu_custom_call.1} parent=11 // pred_fallthru
          _
        // Predicated region
        $region21: #{tpu_custom_call.1} parent=11 // pred_check
          %p318 = pneg %p130
        $region22: #{tpu_custom_call.1} parent=11 // pred_check_branch
          %320 = sbr.rel (%p318) target = $region24
        $region23: #{tpu_custom_call.1} parent=11 // pred_region
          %s322 = ssub.s32 256, 256
          %323 = vsyncadd [#allocation9], %s322
          %s324 = sshll.u32 [#allocation8], 4
          %s325 = int_to_ptr.vmem [resolvable:$true] %s324
          %330 = dma.hbm_to_vmem [thread:$0]  %s3, 256, %s325, [#allocation9], 64, 64, 4
        $region24: #{tpu_custom_call.1} parent=11 // pred_fallthru
          _
        // Predicated region
        $region25: #{tpu_custom_call.1} parent=11 // pred_check
          %p331 = pneg %p151
        $region26: #{tpu_custom_call.1} parent=11 // pred_check_branch
          %333 = sbr.rel (%p331) target = $region28
        $region27: #{tpu_custom_call.1} parent=11 // pred_region
          _
        $region28: #{tpu_custom_call.1} parent=11 // pred_fallthru
          _
        // Predicated region
        $region29: #{tpu_custom_call.1} parent=11 // pred_check
          %p334 = pneg %p172
        $region30: #{tpu_custom_call.1} parent=11 // pred_check_branch
          %336 = sbr.rel (%p334) target = $region32
        $region31: #{tpu_custom_call.1} parent=11 // pred_region
          _
        $region32: #{tpu_custom_call.1} parent=11 // pred_fallthru
          _
        // Predicated region
        $region33: #{tpu_custom_call.1} parent=11 // pred_check
          %p337 = pneg %p193
        $region34: #{tpu_custom_call.1} parent=11 // pred_check_branch
          %339 = sbr.rel (%p337) target = $region36
        $region35: #{tpu_custom_call.1} parent=11 // pred_region
          _
        $region36: #{tpu_custom_call.1} parent=11 // pred_fallthru
          _
      $region12: #{tpu_custom_call.1} parent=5 // pred_fallthru
        _
      %p340 = scmp.lt.s32.totalorder %s27, 2
      // Predicated region
      $region37: #{tpu_custom_call.1} parent=5 // pred_check
        %p341 = pneg %p340
      $region38: #{tpu_custom_call.1} parent=5 // pred_check_branch
        %343 = sbr.rel (%p341) target = $region40
      $region39: #{tpu_custom_call.1} parent=5 // pred_region
        // Predicated region
        $region41: #{tpu_custom_call.1} parent=39 // pred_check
          %p344 = pneg %p61
        $region42: #{tpu_custom_call.1} parent=39 // pred_check_branch
          %346 = sbr.rel (%p344) target = $region44
        $region43: #{tpu_custom_call.1} parent=39 // pred_region
          %s347 = sand.u32 %s51, 1
          %s348 = scalar_lea.sflag [#allocation3], %s347
          %s349 = sand.u32 %s51, 1
          %s350 = smul.addr %s349, 4
          %s351 = scalar_lea.vmem [#allocation2], %s350
          %s353 = ssub.s32 64, 64
          %354 = vsyncadd %s348, %s353
          %s355 = sadd.s32 %s35, %s34
          %s356 = smul.addr %s355, 64
          %s357 = scalar_lea.hbm %s0, %s356
          %s359 = sshll.u32 %s351, 4
          %s360 = int_to_ptr.vmem [resolvable:$true] %s359
          %362 = dma.hbm_to_vmem [thread:$0]  %s357, 64, %s360, %s348
        $region44: #{tpu_custom_call.1} parent=39 // pred_fallthru
          _
      $region40: #{tpu_custom_call.1} parent=5 // pred_fallthru
        _
      %p363 = scmp.le.s32.totalorder 1, %s27
      %p364 = scmp.lt.s32.totalorder %s27, 3
      %p365 = pnand %p363, %p364
      %p366 = pneg %p365
      // Predicated region
      $region45: #{tpu_custom_call.1} parent=5 // pred_check
        _
      $region46: #{tpu_custom_call.1} parent=5 // pred_check_branch
        %368 = sbr.rel (%p365) target = $region48
      $region47: #{tpu_custom_call.1} parent=5 // pred_region
        %s369 = ssub.s32 %s27, 1
        %s370 = sand.u32 %s54, 1
        %s371 = scalar_lea.sflag [#allocation3], %s370
        %s372 = sand.u32 %s54, 1
        %s373 = smul.addr %s372, 4
        %s374 = scalar_lea.vmem [#allocation2], %s373
        // Predicated region
        $region49: #{tpu_custom_call.1} parent=47 // pred_check
          %p375 = pneg %p67
        $region50: #{tpu_custom_call.1} parent=47 // pred_check_branch
          %377 = sbr.rel (%p375) target = $region52
        $region51: #{tpu_custom_call.1} parent=47 // pred_region
          %378 = dma.done %s371, 64
        $region52: #{tpu_custom_call.1} parent=47 // pred_fallthru
          _
        // Predicated region
        $region53: #{tpu_custom_call.1} parent=47 // pred_check
          %p379 = pneg %p88
        $region54: #{tpu_custom_call.1} parent=47 // pred_check_branch
          %381 = sbr.rel (%p379) target = $region56
        $region55: #{tpu_custom_call.1} parent=47 // pred_region
          %382 = dma.done [#allocation6], 256
        $region56: #{tpu_custom_call.1} parent=47 // pred_fallthru
          _
        // Predicated region
        $region57: #{tpu_custom_call.1} parent=47 // pred_check
          %p383 = pneg %p109
        $region58: #{tpu_custom_call.1} parent=47 // pred_check_branch
          %385 = sbr.rel (%p383) target = $region60
        $region59: #{tpu_custom_call.1} parent=47 // pred_region
          %386 = dma.done [#allocation6], 256
        $region60: #{tpu_custom_call.1} parent=47 // pred_fallthru
          _
        // Predicated region
        $region61: #{tpu_custom_call.1} parent=47 // pred_check
          %p387 = pneg %p130
        $region62: #{tpu_custom_call.1} parent=47 // pred_check_branch
          %389 = sbr.rel (%p387) target = $region64
        $region63: #{tpu_custom_call.1} parent=47 // pred_region
          %390 = dma.done [#allocation9], 256
        $region64: #{tpu_custom_call.1} parent=47 // pred_fallthru
          _
        %s391 = sand.u32 %s54, 1
        %s392 = scalar_lea.sflag [#allocation3], %s391
        %s393 = sand.u32 %s54, 1
        %s394 = smul.addr %s393, 4
        %s395 = scalar_lea.vmem [#allocation2], %s394
        %p396 = pneg %p67
        %p397 = pneg %p64
        %p398 = pneg %p88
        %p399 = pneg %p85
        %p400 = pneg %p109
        %p401 = pneg %p106
        %p402 = pneg %p130
        %p403 = pneg %p127
        %p404 = pneg %p151
        %p405 = pneg %p148
        %p406 = pneg %p172
        %p407 = pneg %p169
        %p408 = pneg %p193
        %p409 = pneg %p190
        %p410 = pneg %p221
        %p411 = pneg %p218
        %s412 = sand.u32 %s208, 1
        %s413 = scalar_lea.sflag [#allocation4], %s412
        %s414 = sand.u32 %s208, 1
        %s415 = smul.addr %s414, 4
        %s416 = scalar_lea.vmem [#allocation10], %s415
        %p417 = pneg %p249
        %p418 = pneg %p246
        %s419 = sand.u32 %s32, 1
        %s420 = scalar_lea.sflag [#allocation12], %s419
        %s421 = sand.u32 %s236, 1
        %s422 = smul.addr %s421, 4
        %s423 = scalar_lea.vmem [#allocation11], %s422
        %p424 = pneg %p277
        %p425 = pneg %p274
        %s426 = sand.u32 %s32, 1
        %s427 = scalar_lea.sflag [#allocation12], %s426
        %s428 = sand.u32 %s264, 1
        %s429 = smul.addr %s428, 4
        %s430 = scalar_lea.vmem [#allocation13], %s429
        %v432 = vld [vmem:[%s374] sm:$0xf]
        %v433 = vld [vmem:[#allocation5] sm:$0xf]
        %v434 = vld [vmem:[#allocation5 + $0x4] sm:$0xf]
        %v435 = vld [vmem:[#allocation5 + $0x8] sm:$0xf]
        %v436 = vld [vmem:[#allocation5 + $0xc] sm:$0xf]
        %v437 = vld [vmem:[%s4] sm:$0x1]
        %v439 = vlaneseq
        %v440 = vshrl.u32 %v439, 7
        %v441 = vsub.s32 0, %v440
        %v442 = vrot.slane %v437, %v441
        %v448 = vunpack.c.l.b16 %v433
        %v449 = vunpack.c.l.b16 %v434
        %v450 = vunpack.c.l.b16 %v435
        %v451 = vunpack.c.l.b16 %v436
        %v452 = vpack.c.b16 %v449, %v448
        %v453 = vpack.c.b16 %v451, %v450
        %vm456 = vcmask 261120
        %v458 = vsel %vm456, %v432, 0
        %460 = vmatprep.subr.bf16.mxu0 0
        %461 = vmatpush1.bf16.msra.mxu0 0
        %462 = vmatprep.subr.bf16.mxu0 0
        %463 = vmatpush1.bf16.msra.mxu0 0
        %464 = vmatprep.subr.bf16.mxu0 0
        %465 = vmatpush1.bf16.msra.mxu0 0
        %466 = vmatprep.subr.bf16.mxu0 0
        %467 = vmatpush1.bf16.msra.mxu0 0
        %468 = vmatprep.subr.bf16.mxu0 0
        %469 = vmatpush1.bf16.msra.mxu0 0
        %470 = vmatprep.subr.bf16.mxu0 0
        %471 = vmatpush1.bf16.msra.mxu0 0
        %472 = vmatprep.subr.bf16.mxu0 0
        %473 = vmatpush1.bf16.msra.mxu0 %v453
        %474 = vmatprep.subr.bf16.mxu0 0
        %475 = vmatpush1.bf16.msra.mxu0 %v452
        %476 = vmatprep.subr.bf16.mxu0 0
        %477 = vmatpush2.bf16.msra.mxu0 0
        %478 = vmatprep.subr.bf16.mxu0 0
        %479 = vmatpush2.bf16.msra.mxu0 0
        %480 = vmatprep.subr.bf16.mxu0 0
        %481 = vmatpush2.bf16.msra.mxu0 0
        %482 = vmatprep.subr.bf16.mxu0 0
        %483 = vmatpush2.bf16.msra.mxu0 0
        %484 = vmatprep.subr.bf16.mxu0 0
        %485 = vmatpush2.bf16.msra.mxu0 0
        %486 = vmatprep.subr.bf16.mxu0 0
        %487 = vmatpush2.bf16.msra.mxu0 0
        %488 = vmatprep.subr.bf16.mxu0 0
        %489 = vmatpush2.bf16.msra.mxu0 0
        %490 = vmatprep.subr.bf16.mxu0 0
        %491 = vmatpush2.bf16.msra.mxu0 0
        %492 = vmatprep.mubr.bf16.mxu0 0
        %493 = vmatmul.mubr.bf16.gmra.mxu0 %v458
        %v494 = vpop.f32.mrf.mxu0
        %v495 = vadd.f32 %v442, %v494
        %v496 = vpop.f32.mrf.mxu0
        %v497 = vpop.f32.mrf.mxu0
        %v498 = vpop.f32.mrf.mxu0
        %499 = vdwg.mxu0
        %v500 = vld [vmem:[#allocation7] sm:$0xf]
        %v501 = vld [vmem:[#allocation7 + $0x4] sm:$0xf]
        %v502 = vld [vmem:[#allocation7 + $0x8] sm:$0xf]
        %v503 = vld [vmem:[#allocation7 + $0xc] sm:$0xf]
        %v504 = vld [vmem:[%s5] sm:$0x1]
        %v506 = vlaneseq
        %v507 = vshrl.u32 %v506, 7
        %v508 = vsub.s32 0, %v507
        %v509 = vrot.slane %v504, %v508
        %v515 = vunpack.c.l.b16 %v500
        %v516 = vunpack.c.l.b16 %v501
        %v517 = vunpack.c.l.b16 %v502
        %v518 = vunpack.c.l.b16 %v503
        %v519 = vpack.c.b16 %v516, %v515
        %v520 = vpack.c.b16 %v518, %v517
        %523 = vmatprep.subr.bf16.mxu0 0
        %524 = vmatpush1.bf16.msra.mxu0 0
        %525 = vmatprep.subr.bf16.mxu0 0
        %526 = vmatpush1.bf16.msra.mxu0 0
        %527 = vmatprep.subr.bf16.mxu0 0
        %528 = vmatpush1.bf16.msra.mxu0 0
        %529 = vmatprep.subr.bf16.mxu0 0
        %530 = vmatpush1.bf16.msra.mxu0 0
        %531 = vmatprep.subr.bf16.mxu0 0
        %532 = vmatpush1.bf16.msra.mxu0 0
        %533 = vmatprep.subr.bf16.mxu0 0
        %534 = vmatpush1.bf16.msra.mxu0 0
        %535 = vmatprep.subr.bf16.mxu0 0
        %536 = vmatpush1.bf16.msra.mxu0 %v520
        %537 = vmatprep.subr.bf16.mxu0 0
        %538 = vmatpush1.bf16.msra.mxu0 %v519
        %539 = vmatprep.subr.bf16.mxu0 0
        %540 = vmatpush2.bf16.msra.mxu0 0
        %541 = vmatprep.subr.bf16.mxu0 0
        %542 = vmatpush2.bf16.msra.mxu0 0
        %543 = vmatprep.subr.bf16.mxu0 0
        %544 = vmatpush2.bf16.msra.mxu0 0
        %545 = vmatprep.subr.bf16.mxu0 0
        %546 = vmatpush2.bf16.msra.mxu0 0
        %547 = vmatprep.subr.bf16.mxu0 0
        %548 = vmatpush2.bf16.msra.mxu0 0
        %549 = vmatprep.subr.bf16.mxu0 0
        %550 = vmatpush2.bf16.msra.mxu0 0
        %551 = vmatprep.subr.bf16.mxu0 0
        %552 = vmatpush2.bf16.msra.mxu0 0
        %553 = vmatprep.subr.bf16.mxu0 0
        %554 = vmatpush2.bf16.msra.mxu0 0
        %555 = vmatprep.mubr.bf16.mxu0 0
        %556 = vmatmul.mubr.bf16.gmra.mxu0 %v458
        %v557 = vpop.f32.mrf.mxu0
        %v558 = vadd.f32 %v509, %v557
        %v559 = vpop.f32.mrf.mxu0
        %v560 = vpop.f32.mrf.mxu0
        %v561 = vpop.f32.mrf.mxu0
        %562 = vdwg.mxu0
        %v563 = vld [vmem:[#allocation8] sm:$0xf]
        %v564 = vld [vmem:[#allocation8 + $0x4] sm:$0xf]
        %v565 = vld [vmem:[#allocation8 + $0x8] sm:$0xf]
        %v566 = vld [vmem:[#allocation8 + $0xc] sm:$0xf]
        %v567 = vld [vmem:[%s6] sm:$0x1]
        %v569 = vlaneseq
        %v570 = vshrl.u32 %v569, 7
        %v571 = vsub.s32 0, %v570
        %v572 = vrot.slane %v567, %v571
        %v578 = vunpack.c.l.b16 %v563
        %v579 = vunpack.c.l.b16 %v564
        %v580 = vunpack.c.l.b16 %v565
        %v581 = vunpack.c.l.b16 %v566
        %v582 = vpack.c.b16 %v579, %v578
        %v583 = vpack.c.b16 %v581, %v580
        %586 = vmatprep.subr.bf16.mxu0 0
        %587 = vmatpush1.bf16.msra.mxu0 0
        %588 = vmatprep.subr.bf16.mxu0 0
        %589 = vmatpush1.bf16.msra.mxu0 0
        %590 = vmatprep.subr.bf16.mxu0 0
        %591 = vmatpush1.bf16.msra.mxu0 0
        %592 = vmatprep.subr.bf16.mxu0 0
        %593 = vmatpush1.bf16.msra.mxu0 0
        %594 = vmatprep.subr.bf16.mxu0 0
        %595 = vmatpush1.bf16.msra.mxu0 0
        %596 = vmatprep.subr.bf16.mxu0 0
        %597 = vmatpush1.bf16.msra.mxu0 0
        %598 = vmatprep.subr.bf16.mxu0 0
        %599 = vmatpush1.bf16.msra.mxu0 %v583
        %600 = vmatprep.subr.bf16.mxu0 0
        %601 = vmatpush1.bf16.msra.mxu0 %v582
        %602 = vmatprep.subr.bf16.mxu0 0
        %603 = vmatpush2.bf16.msra.mxu0 0
        %604 = vmatprep.subr.bf16.mxu0 0
        %605 = vmatpush2.bf16.msra.mxu0 0
        %606 = vmatprep.subr.bf16.mxu0 0
        %607 = vmatpush2.bf16.msra.mxu0 0
        %608 = vmatprep.subr.bf16.mxu0 0
        %609 = vmatpush2.bf16.msra.mxu0 0
        %610 = vmatprep.subr.bf16.mxu0 0
        %611 = vmatpush2.bf16.msra.mxu0 0
        %612 = vmatprep.subr.bf16.mxu0 0
        %613 = vmatpush2.bf16.msra.mxu0 0
        %614 = vmatprep.subr.bf16.mxu0 0
        %615 = vmatpush2.bf16.msra.mxu0 0
        %616 = vmatprep.subr.bf16.mxu0 0
        %617 = vmatpush2.bf16.msra.mxu0 0
        %618 = vmatprep.mubr.bf16.mxu0 0
        %619 = vmatmul.mubr.bf16.gmra.mxu0 %v458
        %v620 = vpop.f32.mrf.mxu0
        %v621 = vadd.f32 %v572, %v620
        %v622 = vpop.f32.mrf.mxu0
        %v623 = vpop.f32.mrf.mxu0
        %v624 = vpop.f32.mrf.mxu0
        %625 = vdwg.mxu0
        %v626 = vpack.c.bf16 %v495, %v495
        %vm627 = vcmask 257024
        %628 = vst.msk [vmem:[%s416] sm:$0xf] %vm627, %v626
        %v629 = vpack.c.bf16 %v558, %v558
        %630 = vst.msk [vmem:[%s423] sm:$0xf] %vm627, %v629
        %v631 = vpack.c.bf16 %v621, %v621
        %632 = vst.msk [vmem:[%s430] sm:$0xf] %vm627, %v631
        %s633 = sand.u32 %s208, 1
        %s634 = scalar_lea.sflag [#allocation4], %s633
        %s635 = sand.u32 %s208, 1
        %s636 = smul.addr %s635, 4
        %s637 = scalar_lea.vmem [#allocation10], %s636
        %s638 = sand.u32 %s32, 1
        %s639 = scalar_lea.sflag [#allocation12], %s638
        %s640 = sand.u32 %s236, 1
        %s641 = smul.addr %s640, 4
        %s642 = scalar_lea.vmem [#allocation11], %s641
        %s643 = sand.u32 %s32, 1
        %s644 = scalar_lea.sflag [#allocation12], %s643
        %s645 = sand.u32 %s264, 1
        %s646 = smul.addr %s645, 4
        %s647 = scalar_lea.vmem [#allocation13], %s646
        // Predicated region
        $region65: #{tpu_custom_call.1} parent=47 // pred_check
          %p648 = pneg %p218
        $region66: #{tpu_custom_call.1} parent=47 // pred_check_branch
          %650 = sbr.rel (%p648) target = $region68
        $region67: #{tpu_custom_call.1} parent=47 // pred_region
          %s652 = ssub.s32 64, 64
          %653 = vsyncadd %s634, %s652
          %s654 = sadd.s32 %s37, %s36
          %s655 = smul.addr %s654, 64
          %s656 = scalar_lea.hbm %s7, %s655
          %s658 = sshll.u32 %s637, 4
          %s659 = int_to_ptr.vmem [resolvable:$true] %s658
          %661 = dma.vmem_to_hbm [thread:$0]  %s659, 64, %s656, %s634
        $region68: #{tpu_custom_call.1} parent=47 // pred_fallthru
          _
        // Predicated region
        $region69: #{tpu_custom_call.1} parent=47 // pred_check
          %p662 = pneg %p246
        $region70: #{tpu_custom_call.1} parent=47 // pred_check_branch
          %664 = sbr.rel (%p662) target = $region72
        $region71: #{tpu_custom_call.1} parent=47 // pred_region
          %s666 = ssub.s32 64, 64
          %667 = vsyncadd %s639, %s666
          %s668 = sadd.s32 %s37, %s36
          %s669 = smul.addr %s668, 64
          %s670 = scalar_lea.hbm %s8, %s669
          %s672 = sshll.u32 %s642, 4
          %s673 = int_to_ptr.vmem [resolvable:$true] %s672
          %675 = dma.vmem_to_hbm [thread:$0]  %s673, 64, %s670, %s639
        $region72: #{tpu_custom_call.1} parent=47 // pred_fallthru
          _
        // Predicated region
        $region73: #{tpu_custom_call.1} parent=47 // pred_check
          %p676 = pneg %p274
        $region74: #{tpu_custom_call.1} parent=47 // pred_check_branch
          %678 = sbr.rel (%p676) target = $region76
        $region75: #{tpu_custom_call.1} parent=47 // pred_region
          %s680 = ssub.s32 64, 64
          %681 = vsyncadd %s644, %s680
          %s682 = sadd.s32 %s37, %s36
          %s683 = smul.addr %s682, 64
          %s684 = scalar_lea.hbm %s9, %s683
          %s686 = sshll.u32 %s647, 4
          %s687 = int_to_ptr.vmem [resolvable:$true] %s686
          %689 = dma.vmem_to_hbm [thread:$0]  %s687, 64, %s684, %s644
        $region76: #{tpu_custom_call.1} parent=47 // pred_fallthru
          _
      $region48: #{tpu_custom_call.1} parent=5 // pred_fallthru
        _
      %p690 = scmp.le.s32.totalorder 2, %s27
      // Predicated region
      $region77: #{tpu_custom_call.1} parent=5 // pred_check
        %p691 = pneg %p690
      $region78: #{tpu_custom_call.1} parent=5 // pred_check_branch
        %693 = sbr.rel (%p691) target = $region80
      $region79: #{tpu_custom_call.1} parent=5 // pred_region
        %s694 = ssub.s32 %s27, 2
        // Predicated region
        $region81: #{tpu_custom_call.1} parent=79 // pred_check
          %p695 = pneg %p224
        $region82: #{tpu_custom_call.1} parent=79 // pred_check_branch
          %697 = sbr.rel (%p695) target = $region84
        $region83: #{tpu_custom_call.1} parent=79 // pred_region
          %s698 = sand.u32 %s209, 1
          %s699 = scalar_lea.sflag [#allocation4], %s698
          %s700 = sand.u32 %s209, 1
          %s701 = smul.addr %s700, 4
          %s702 = scalar_lea.vmem [#allocation10], %s701
          %703 = dma.done %s699, 64
        $region84: #{tpu_custom_call.1} parent=79 // pred_fallthru
          _
        // Predicated region
        $region85: #{tpu_custom_call.1} parent=79 // pred_check
          %p704 = pneg %p252
        $region86: #{tpu_custom_call.1} parent=79 // pred_check_branch
          %706 = sbr.rel (%p704) target = $region88
        $region87: #{tpu_custom_call.1} parent=79 // pred_region
          %s707 = sand.u32 %s33, 1
          %s708 = scalar_lea.sflag [#allocation12], %s707
          %s709 = sand.u32 %s237, 1
          %s710 = smul.addr %s709, 4
          %s711 = scalar_lea.vmem [#allocation11], %s710
          %712 = dma.done %s708, 64
        $region88: #{tpu_custom_call.1} parent=79 // pred_fallthru
          _
        // Predicated region
        $region89: #{tpu_custom_call.1} parent=79 // pred_check
          %p713 = pneg %p280
        $region90: #{tpu_custom_call.1} parent=79 // pred_check_branch
          %715 = sbr.rel (%p713) target = $region92
        $region91: #{tpu_custom_call.1} parent=79 // pred_region
          %s716 = sand.u32 %s33, 1
          %s717 = scalar_lea.sflag [#allocation12], %s716
          %s718 = sand.u32 %s265, 1
          %s719 = smul.addr %s718, 4
          %s720 = scalar_lea.vmem [#allocation13], %s719
          %721 = dma.done %s717, 64
        $region92: #{tpu_custom_call.1} parent=79 // pred_fallthru
          _
      $region80: #{tpu_custom_call.1} parent=5 // pred_fallthru
        _
    $region6: #{tpu_custom_call.1} parent=1 // loop_footer
      %s31 = sadd.s32 1, %s27
    $region7: #{tpu_custom_call.1} parent=1 // loop_footer_branch
      %26 = sbr.rel target = $region3
    $region8: #{tpu_custom_call.1} parent=1 // loop_exit
      _
    %722 = vsyncpa [#allocation3], 1
    %s723 = scalar_lea.sflag [#allocation3], 1
    %724 = vsyncpa %s723, 1
    %725 = vsyncpa [#allocation6], 1
    %726 = vsyncpa [#allocation9], 1
    %727 = vsyncpa [#allocation4], 1
    %s728 = scalar_lea.sflag [#allocation4], 1
    %729 = vsyncpa %s728, 1
    %730 = vsyncpa [#allocation12], 1
    %s731 = scalar_lea.sflag [#allocation12], 1
    %732 = vsyncpa %s731, 1

</llo_original>
